<compile_context>
chip_gen: v7x
topology: tpu7x:2x2x1
jax: 0.10.0
libtpu: 0.0.40
codegen_flags: <defaults>
</compile_context>

<pallas_src>
import functools

import jax
import jax.numpy as jnp
from jax import lax
from jax.experimental import pallas as pl
from jax.experimental.pallas import tpu as pltpu


def _focal_loss_kernel(x_ref, t_ref, alpha_ref, out_ref, *,
                       gamma, use_alpha, hw, lane_tile, ragged):
    """x_ref: (1, C, t); t_ref: (1, 1, t) int32; alpha_ref: (C, 1);
    out_ref: (1, 1, t) f32 partial sums, resident across the j grid axis."""
    j = pl.program_id(1)

    @pl.when(j == 0)
    def _():
        out_ref[...] = jnp.zeros_like(out_ref)

    x = x_ref[...].astype(jnp.float32)            # (1, C, t)
    tgt = t_ref[...]                              # (1, 1, t) int32

    # log_softmax over the class axis (sublane axis, small C -> cheap reduce).
    m = jnp.max(x, axis=1, keepdims=True)         # (1, 1, t)
    z = x - m                                     # (1, C, t)
    sumexp = jnp.sum(jnp.exp(z), axis=1, keepdims=True)       # (1, 1, t)
    lse = jnp.log(sumexp)                                       # (1, 1, t)

    # gather(1, target) via one-hot select along the class axis; only the
    # selected shifted logit is reduced (log-softmax never materialized).
    cls = lax.broadcasted_iota(jnp.int32, x.shape, 1)           # (1, C, t)
    onehot = cls == tgt                                         # (1, C, t)

    zt = jnp.sum(jnp.where(onehot, z, 0.0), axis=1, keepdims=True)  # (1,1,t)
    logpt = zt - lse                                            # (1, 1, t)
    pt = jnp.exp(logpt)                                         # before alpha

    if use_alpha:
        a = alpha_ref[...].astype(jnp.float32)[None, :, :]      # (1, C, 1)
        at = jnp.sum(jnp.where(onehot, a, 0.0), axis=1, keepdims=True)
        logpt = logpt * at

    # focal modulation, specialized on gamma at trace time
    g = float(gamma)
    if g == 0.0:
        loss = -logpt
    else:
        one_minus_pt = 1.0 - pt
        if g.is_integer() and 1.0 <= g <= 8.0:
            f = one_minus_pt
            for _ in range(int(g) - 1):
                f = f * one_minus_pt
        else:
            f = jnp.power(one_minus_pt, g)
        loss = -(f * logpt)

    if ragged:
        # mask the out-of-range tail columns of the last block (OOB DMA data
        # only ever produces garbage in masked columns; columns never mix).
        col = j * lane_tile + lax.broadcasted_iota(jnp.int32, loss.shape, 2)
        loss = jnp.where(col < hw, loss, 0.0)

    out_ref[...] += loss


def _pick_lane_tile(C, HW, lane_tile):
    """Lane tile: multiple of 128, bounded by a ~8 MiB/block logits budget.
    If the whole spatial extent fits in one tile, use it exactly (full-dim
    blocks are always legal, even when HW is not a multiple of 128)."""
    budget = max(128, ((8 << 20) // (4 * max(C, 1)) // 128) * 128)
    t = max(128, (min(lane_tile, budget) // 128) * 128)
    if HW <= t:
        return HW
    return t


def focal_loss(logits_nchw, target_nhw, *, gamma=0.0, alpha=None,
               size_average=True, lane_tile=32768):
    """logits_nchw: (N, C, H, W) float; target_nhw: (N, H, W) int."""
    N, C, H, W = logits_nchw.shape
    HW = H * W

    # Free reshapes only — no transpose, no extra HBM copy of the logits.
    x = logits_nchw.reshape(N, C, HW)
    t = target_nhw.reshape(N, 1, HW).astype(jnp.int32)

    if alpha is None:
        use_alpha = False
        alpha_vec = jnp.zeros((C, 1), dtype=jnp.float32)   # unused placeholder
    elif isinstance(alpha, (float, int)):
        # PyTorch builds [alpha, 1 - alpha]; only meaningful for binary C == 2.
        assert C == 2, "scalar alpha implies binary classification (C == 2)"
        use_alpha = True
        alpha_vec = jnp.array([[float(alpha)], [1.0 - float(alpha)]],
                              dtype=jnp.float32)
    else:
        use_alpha = True
        alpha_vec = jnp.asarray(alpha, dtype=jnp.float32).reshape(C, 1)

    tl = _pick_lane_tile(C, HW, lane_tile)
    J = pl.cdiv(HW, tl)
    ragged = (HW % tl) != 0

    kernel = functools.partial(
        _focal_loss_kernel, gamma=float(gamma), use_alpha=use_alpha,
        hw=HW, lane_tile=tl, ragged=ragged)

    partial_sums = pl.pallas_call(
        kernel,
        out_shape=jax.ShapeDtypeStruct((N, 1, tl), jnp.float32),
        grid_spec=pltpu.PrefetchScalarGridSpec(
            num_scalar_prefetch=0,
            grid=(N, J),
            in_specs=[
                pl.BlockSpec((1, C, tl), lambda n, j: (n, 0, j)),   # logits
                pl.BlockSpec((1, 1, tl), lambda n, j: (n, 0, j)),   # targets
                pl.BlockSpec((C, 1), lambda n, j: (0, 0)),          # alpha (resident)
            ],
            out_specs=pl.BlockSpec((1, 1, tl), lambda n, j: (n, 0, 0)),
        ),
        compiler_params=pltpu.CompilerParams(
            dimension_semantics=("parallel", "arbitrary")),
    )(x, t, alpha_vec)

    # Tiny final reduction (N x tile elements) done by XLA outside the kernel.
    total = jnp.sum(partial_sums)
    if size_average:
        return total / jnp.float32(N * HW)
    return total


def _focal_loss_ref(logits_nchw, target_nhw, *, gamma, alpha_vec, size_average):
    """Pure-JAX reference matching the PyTorch module."""
    N, C, H, W = logits_nchw.shape
    x = jnp.transpose(logits_nchw.reshape(N, C, H * W), (0, 2, 1)).reshape(-1, C)
    t = target_nhw.reshape(-1).astype(jnp.int32)
    logp = jax.nn.log_softmax(x.astype(jnp.float32), axis=1)
    logpt = jnp.take_along_axis(logp, t[:, None], axis=1)[:, 0]
    pt = jnp.exp(logpt)
    if alpha_vec is not None:
        logpt = logpt * alpha_vec[t]
    loss = -1.0 * jnp.power(1.0 - pt, gamma) * logpt
    return loss.mean() if size_average else loss.sum()


if __name__ == "__main__":
    key = jax.random.PRNGKey(0)
    k1, k2 = jax.random.split(key)

    N, C, H, W = 2, 4, 16, 16
    gamma = 2.0
    alpha = [0.25, 0.5, 0.75, 1.0]
    size_average = True

    logits = jax.random.normal(k1, (N, C, H, W), dtype=jnp.float32)
    target = jax.random.randint(k2, (N, H, W), 0, C, dtype=jnp.int32)

    out = focal_loss(logits, target, gamma=gamma, alpha=alpha,
                     size_average=size_average)
    out = jax.block_until_ready(out)

    ref = _focal_loss_ref(logits, target, gamma=gamma,
                          alpha_vec=jnp.asarray(alpha, jnp.float32),
                          size_average=size_average)
    assert jnp.allclose(out, ref, rtol=1e-5, atol=1e-6), (out, ref)

    print("KERNEL_OK")
</pallas_src>

<mosaic_0001>
module attributes {stable_mosaic.version = 11 : i64} {
  func.func @_focal_loss_kernel(%arg0: i32, %arg1: i32, %arg2: memref<1x4x256xf32, #tpu.memory_space<vmem>>, %arg3: memref<1x1x256xi32, #tpu.memory_space<vmem>>, %arg4: memref<4x1xf32, #tpu.memory_space<vmem>>, %arg5: memref<1x1x256xf32, #tpu.memory_space<vmem>>) attributes {dimension_semantics = [#tpu.dimension_semantics<parallel>, #tpu.dimension_semantics<arbitrary>], iteration_bounds = array<i64: 2, 1>, scalar_prefetch = 0 : i64, scratch_operands = 0 : i64, tpu.core_type = #tpu.core_type<tc>, window_params = [{transform_indices = @transform_0, window_bounds = array<i64: 1, 4, 256>}, {transform_indices = @transform_1, window_bounds = array<i64: 1, 1, 256>}, {pipeline_mode = #tpu.pipeline_mode<synchronous>, transform_indices = @transform_2, window_bounds = array<i64: 4, 1>}, {transform_indices = @transform_3, window_bounds = array<i64: 1, 1, 256>}]} {
    %c0_i32 = arith.constant 0 : i32
    %0 = arith.cmpi eq, %arg1, %c0_i32 : i32
    %1 = arith.extui %0 : i1 to i32
    %c0_i32_0 = arith.constant 0 : i32
    %2 = arith.cmpi ne, %1, %c0_i32_0 : i32
    scf.if %2 {
      %cst_21 = arith.constant 0.000000e+00 : f32
      %40 = vector.broadcast %cst_21 : f32 to vector<1x1x256xf32>
      %c0_22 = arith.constant 0 : index
      %c0_23 = arith.constant 0 : index
      %c0_24 = arith.constant 0 : index
      %41 = vector.load %arg5[%c0_22, %c0_23, %c0_24] : memref<1x1x256xf32, #tpu.memory_space<vmem>>, vector<1x1x256xf32>
      tpu.vector_store %arg5[%c0_22, %c0_23, %c0_24], %40 {strides = array<i32>} : memref<1x1x256xf32, #tpu.memory_space<vmem>>, vector<1x1x256xf32>,
    } else {
    }
    %c0 = arith.constant 0 : index
    %c0_1 = arith.constant 0 : index
    %c0_2 = arith.constant 0 : index
    %3 = vector.load %arg2[%c0, %c0_1, %c0_2] : memref<1x4x256xf32, #tpu.memory_space<vmem>>, vector<1x4x256xf32>
    %c0_3 = arith.constant 0 : index
    %c0_4 = arith.constant 0 : index
    %c0_5 = arith.constant 0 : index
    %4 = vector.load %arg3[%c0_3, %c0_4, %c0_5] : memref<1x1x256xi32, #tpu.memory_space<vmem>>, vector<1x1x256xi32>
    %cst = arith.constant dense<0xFF800000> : vector<1x256xf32>
    %5 = vector.multi_reduction <maximumf>, %3, %cst [1] : vector<1x4x256xf32> to vector<1x256xf32>
    %6 = vector.shape_cast %5 : vector<1x256xf32> to vector<1x1x256xf32>
    %7 = vector.broadcast %6 : vector<1x1x256xf32> to vector<1x4x256xf32>
    %8 = arith.subf %3, %7 : vector<1x4x256xf32>
    %9 = math.exp %8 : vector<1x4x256xf32>
    %cst_6 = arith.constant dense<0.000000e+00> : vector<1x256xf32>
    %10 = vector.multi_reduction <add>, %9, %cst_6 [1] : vector<1x4x256xf32> to vector<1x256xf32>
    %11 = vector.shape_cast %10 : vector<1x256xf32> to vector<1x1x256xf32>
    %12 = math.log %11 : vector<1x1x256xf32>
    %13 = tpu.iota {dimensions = array<i32: 1>} : vector<1x4x256xi32>
    %14 = vector.broadcast %4 : vector<1x1x256xi32> to vector<1x4x256xi32>
    %15 = arith.cmpi eq, %13, %14 : vector<1x4x256xi32>
    %cst_7 = arith.constant 0.000000e+00 : f32
    %16 = vector.broadcast %cst_7 : f32 to vector<1x4x256xf32>
    %17 = arith.select %15, %8, %16 : vector<1x4x256xi1>, vector<1x4x256xf32>
    %cst_8 = arith.constant dense<0.000000e+00> : vector<1x256xf32>
    %18 = vector.multi_reduction <add>, %17, %cst_8 [1] : vector<1x4x256xf32> to vector<1x256xf32>
    %19 = vector.shape_cast %18 : vector<1x256xf32> to vector<1x1x256xf32>
    %20 = arith.subf %19, %12 : vector<1x1x256xf32>
    %21 = math.exp %20 : vector<1x1x256xf32>
    %c0_9 = arith.constant 0 : index
    %c0_10 = arith.constant 0 : index
    %22 = vector.load %arg4[%c0_9, %c0_10] : memref<4x1xf32, #tpu.memory_space<vmem>>, vector<4x1xf32>
    %23 = vector.shape_cast %22 : vector<4x1xf32> to vector<1x4x1xf32>
    %cst_11 = arith.constant 0.000000e+00 : f32
    %24 = vector.shape_cast %23 : vector<1x4x1xf32> to vector<1x4x1xf32>
    %25 = vector.broadcast %24 : vector<1x4x1xf32> to vector<1x4x256xf32>
    %26 = vector.broadcast %cst_11 : f32 to vector<1x4x256xf32>
    %27 = arith.select %15, %25, %26 : vector<1x4x256xi1>, vector<1x4x256xf32>
    %cst_12 = arith.constant dense<0.000000e+00> : vector<1x256xf32>
    %28 = vector.multi_reduction <add>, %27, %cst_12 [1] : vector<1x4x256xf32> to vector<1x256xf32>
    %29 = vector.shape_cast %28 : vector<1x256xf32> to vector<1x1x256xf32>
    %30 = arith.mulf %20, %29 : vector<1x1x256xf32>
    %cst_13 = arith.constant 1.000000e+00 : f32
    %31 = vector.broadcast %cst_13 : f32 to vector<1x1x256xf32>
    %32 = arith.subf %31, %21 : vector<1x1x256xf32>
    %33 = arith.mulf %32, %32 : vector<1x1x256xf32>
    %34 = arith.mulf %33, %30 : vector<1x1x256xf32>
    %cst_14 = arith.constant 0.000000e+00 : f32
    %35 = vector.broadcast %cst_14 : f32 to vector<1x1x256xf32>
    %36 = arith.subf %35, %34 : vector<1x1x256xf32>
    %c0_15 = arith.constant 0 : index
    %c0_16 = arith.constant 0 : index
    %c0_17 = arith.constant 0 : index
    %37 = vector.load %arg5[%c0_15, %c0_16, %c0_17] : memref<1x1x256xf32, #tpu.memory_space<vmem>>, vector<1x1x256xf32>
    %38 = arith.addf %37, %36 : vector<1x1x256xf32>
    %c0_18 = arith.constant 0 : index
    %c0_19 = arith.constant 0 : index
    %c0_20 = arith.constant 0 : index
    %39 = vector.load %arg5[%c0_18, %c0_19, %c0_20] : memref<1x1x256xf32, #tpu.memory_space<vmem>>, vector<1x1x256xf32>
    tpu.vector_store %arg5[%c0_18, %c0_19, %c0_20], %38 {strides = array<i32>} : memref<1x1x256xf32, #tpu.memory_space<vmem>>, vector<1x1x256xf32>,
    return
  }
  func.func @transform_0(%arg0: i32, %arg1: i32) -> (i32, i32, i32) {
    %c0_i32 = arith.constant 0 : i32
    %c0_i32_0 = arith.constant 0 : i32
    return %arg0, %c0_i32, %arg1 : i32, i32, i32
  }
  func.func @transform_1(%arg0: i32, %arg1: i32) -> (i32, i32, i32) {
    %c0_i32 = arith.constant 0 : i32
    %c0_i32_0 = arith.constant 0 : i32
    return %arg0, %c0_i32, %arg1 : i32, i32, i32
  }
  func.func @transform_2(%arg0: i32, %arg1: i32) -> (i32, i32) {
    %c0_i32 = arith.constant 0 : i32
    %c0_i32_0 = arith.constant 0 : i32
    %c0_i32_1 = arith.constant 0 : i32
    return %c0_i32, %c0_i32_0 : i32, i32
  }
  func.func @transform_3(%arg0: i32, %arg1: i32) -> (i32, i32, i32) {
    %c0_i32 = arith.constant 0 : i32
    %c0_i32_0 = arith.constant 0 : i32
    %c0_i32_1 = arith.constant 0 : i32
    return %arg0, %c0_i32, %c0_i32_0 : i32, i32, i32
  }
}

</mosaic_0001>

<llo_original>
// kernel: tpu_custom_call.1
$region0: #{tpu_custom_call.1}
  #allocation0 [shape = 'u32[]', space=smem, size = 0x4, offset = 0x4, fixed_abs, tag = 'smem constant byte address 0x4 - core index']
  #allocation1 [shape = 'u32[144,128]{1,0:T(1,128)}', space=vmem, size = 0x12000, scoped, tag = 'internal scratch']
  %s0 = inlined_call_operand.hbm [shape: f32[2,4,256], index: 0, kind: input, shape index: {}]
  %s1 = inlined_call_operand.vmem [shape: s32[2,1,256], index: 1, kind: input, shape index: {}]
  %s2 = inlined_call_operand.vmem [shape: f32[4,1], index: 2, kind: input, shape index: {}]
  %s3 = inlined_call_operand.hbm [shape: f32[2,1,256], index: 3, kind: output, shape index: {}]
  %s4 = sld [smem:[#allocation0]]
  $region53: #{tpu_custom_call.1} parent=0
    _
  %s6 = ssub.s32 1, %s4
  %s7 = scalar_select 0, %s6, %s4
  $region1: #{tpu_custom_call.1} parent=0
    #allocation2 [shape = 'u8[8192]{0}', space=vmem, size = 0x2000, scoped, tag = 'input window, operand 0']
    #allocation3 [shape = 's32[2]{0}', space=sflag, size = 0x8, scoped, tag = 'scoped memory for tpu_custom_call.1']
    #allocation4 [shape = 's32[2]{0}', space=sflag, size = 0x8, scoped, tag = 'scoped memory for tpu_custom_call.1']
    #allocation5 [shape = 'u8[2048]{0}', space=vmem, size = 0x800, scoped, tag = 'output window, operand 0']
    %8 = vsyncpa [#allocation3], 0
    %s9 = scalar_lea.sflag [#allocation3], 1
    %10 = vsyncpa %s9, 0
    %11 = vsyncpa [#allocation4], 0
    %s12 = scalar_lea.sflag [#allocation4], 1
    %13 = vsyncpa %s12, 0
    loop: start=0, step=1, limit=4
    $region2: #{tpu_custom_call.1} parent=1 // loop_pre_header
      _
    $region3: #{tpu_custom_call.1} parent=1 // loop_header
      %s15 = sphi 0, %s19
      %p16 = scmp.ge.s32.totalorder %s15, 4
      %s22 = sphi 0, %s34
      %s23 = sphi 0, %s30
      %s24 = sphi 0, %s22
      %s25 = sphi 0, %s23
      %s26 = sphi 0, %s24
      %s27 = sphi 0, %s25
      %s39 = sphi 0, %s41
      %s42 = sphi 0, %s39
      %s43 = sphi 0, %s42
      %s59 = sphi 0, %s43
      %s67 = sphi 0, %s69
      %s70 = sphi 0, %s67
      %s71 = sphi 0, %s70
      %s87 = sphi 0, %s71
      %s91 = sphi 0, %s91
      %s93 = sphi 0, %s91
      %s94 = sphi 0, %s93
      %s108 = sphi 0, %s94
      %s114 = sphi 0, %s116
      %s117 = sphi 0, %s114
      %s118 = sphi 0, %s117
      %s134 = sphi 0, %s118
    $region4: #{tpu_custom_call.1} parent=1 // loop_header_branch
      %18 = sbr.rel (%p16) target = $region8
    $region5: #{tpu_custom_call.1} parent=1 // loop_body
      %s20 = ssub.s32 %s15, 1
      %s21 = ssub.s32 %s15, 2
      %s28 = sadd.s32 1, %s23
      %p29 = scmp.ge.s32.totalorder %s28, 1
      %s30 = scalar_select %p29, 0, %s28
      %s31 = sadd.s32 1, %s22
      %s32 = scalar_select %p29, %s31, %s22
      %p33 = scmp.ge.s32.totalorder %s32, 2
      %s34 = scalar_select %p33, 0, %s32
      %s35 = ssub.s32 %s22, %s34
      %s36 = ssub.s32 %s23, %s30
      %s37 = sor.u32 %s35, %s36
      %p38 = scmp.eq.s32.totalorder %s37, 0
      %s40 = sadd.s32 %s39, 1
      %s41 = scalar_select %p38, %s39, %s40
      %p44 = pneg %p38
      %p45 = scmp.eq.s32.totalorder %s15, 1
      %p46 = por %p44, %p45
      %p47 = scmp.ne.s32.totalorder %s39, %s42
      %p48 = scmp.eq.s32.totalorder %s15, 0
      %p49 = por %p47, %p48
      %p50 = scmp.ne.s32.totalorder %s39, %s42
      %p51 = scmp.eq.s32.totalorder %s20, 1
      %p52 = por %p50, %p51
      %p53 = scmp.ne.s32.totalorder %s42, %s43
      %p54 = scmp.eq.s32.totalorder %s20, 0
      %p55 = por %p53, %p54
      %p56 = scmp.ne.s32.totalorder %s42, %s43
      %p57 = scmp.eq.s32.totalorder %s21, 1
      %p58 = por %p56, %p57
      %p60 = scmp.ne.s32.totalorder %s43, %s59
      %p61 = scmp.eq.s32.totalorder %s21, 0
      %p62 = por %p60, %p61
      %s63 = ssub.s32 %s22, %s34
      %s64 = ssub.s32 %s23, %s30
      %s65 = sor.u32 %s63, %s64
      %p66 = scmp.eq.s32.totalorder %s65, 0
      %s68 = sadd.s32 %s67, 1
      %s69 = scalar_select %p66, %s67, %s68
      %p72 = pneg %p66
      %p73 = scmp.eq.s32.totalorder %s15, 1
      %p74 = por %p72, %p73
      %p75 = scmp.ne.s32.totalorder %s67, %s70
      %p76 = scmp.eq.s32.totalorder %s15, 0
      %p77 = por %p75, %p76
      %p78 = scmp.ne.s32.totalorder %s67, %s70
      %p79 = scmp.eq.s32.totalorder %s20, 1
      %p80 = por %p78, %p79
      %p81 = scmp.ne.s32.totalorder %s70, %s71
      %p82 = scmp.eq.s32.totalorder %s20, 0
      %p83 = por %p81, %p82
      %p84 = scmp.ne.s32.totalorder %s70, %s71
      %p85 = scmp.eq.s32.totalorder %s21, 1
      %p86 = por %p84, %p85
      %p88 = scmp.ne.s32.totalorder %s71, %s87
      %p89 = scmp.eq.s32.totalorder %s21, 0
      %p90 = por %p88, %p89
      %s92 = sadd.s32 %s91, 1
      %p95 = scmp.eq.s32.totalorder %s15, 1
      %p96 = scmp.ne.s32.totalorder %s91, %s93
      %p97 = scmp.eq.s32.totalorder %s15, 0
      %p98 = por %p96, %p97
      %p99 = scmp.ne.s32.totalorder %s91, %s93
      %p100 = scmp.eq.s32.totalorder %s20, 1
      %p101 = por %p99, %p100
      %p102 = scmp.ne.s32.totalorder %s93, %s94
      %p103 = scmp.eq.s32.totalorder %s20, 0
      %p104 = por %p102, %p103
      %p105 = scmp.ne.s32.totalorder %s93, %s94
      %p106 = scmp.eq.s32.totalorder %s21, 1
      %p107 = por %p105, %p106
      %p109 = scmp.ne.s32.totalorder %s94, %s108
      %p110 = scmp.eq.s32.totalorder %s21, 0
      %p111 = por %p109, %p110
      %s112 = ssub.s32 %s22, %s34
      %p113 = scmp.eq.s32.totalorder %s112, 0
      %s115 = sadd.s32 %s114, 1
      %s116 = scalar_select %p113, %s114, %s115
      %p119 = pneg %p113
      %p120 = scmp.eq.s32.totalorder %s15, 1
      %p121 = por %p119, %p120
      %p122 = scmp.ne.s32.totalorder %s114, %s117
      %p123 = scmp.eq.s32.totalorder %s15, 0
      %p124 = por %p122, %p123
      %p125 = scmp.ne.s32.totalorder %s114, %s117
      %p126 = scmp.eq.s32.totalorder %s20, 1
      %p127 = por %p125, %p126
      %p128 = scmp.ne.s32.totalorder %s117, %s118
      %p129 = scmp.eq.s32.totalorder %s20, 0
      %p130 = por %p128, %p129
      %p131 = scmp.ne.s32.totalorder %s117, %s118
      %p132 = scmp.eq.s32.totalorder %s21, 1
      %p133 = por %p131, %p132
      %p135 = scmp.ne.s32.totalorder %s118, %s134
      %p136 = scmp.eq.s32.totalorder %s21, 0
      %p137 = por %p135, %p136
      %p138 = scmp.le.s32.totalorder 1, %s15
      %p139 = scmp.lt.s32.totalorder %s15, 3
      %p140 = pnand %p138, %p139
      %p141 = pneg %p140
      // Predicated region
      $region9: #{tpu_custom_call.1} parent=5 // pred_check
        _
      $region10: #{tpu_custom_call.1} parent=5 // pred_check_branch
        %143 = sbr.rel (%p140) target = $region12
      $region11: #{tpu_custom_call.1} parent=5 // pred_region
        %s144 = ssub.s32 %s15, 1
        // Predicated region
        $region13: #{tpu_custom_call.1} parent=11 // pred_check
          %p145 = pneg %p104
        $region14: #{tpu_custom_call.1} parent=11 // pred_check_branch
          %147 = sbr.rel (%p145) target = $region16
        $region15: #{tpu_custom_call.1} parent=11 // pred_region
          _
        $region16: #{tpu_custom_call.1} parent=11 // pred_fallthru
          _
      $region12: #{tpu_custom_call.1} parent=5 // pred_fallthru
        _
      %p148 = scmp.lt.s32.totalorder %s15, 2
      // Predicated region
      $region17: #{tpu_custom_call.1} parent=5 // pred_check
        %p149 = pneg %p148
      $region18: #{tpu_custom_call.1} parent=5 // pred_check_branch
        %151 = sbr.rel (%p149) target = $region20
      $region19: #{tpu_custom_call.1} parent=5 // pred_region
        // Predicated region
        $region21: #{tpu_custom_call.1} parent=19 // pred_check
          %p152 = pneg %p49
        $region22: #{tpu_custom_call.1} parent=19 // pred_check_branch
          %154 = sbr.rel (%p152) target = $region24
        $region23: #{tpu_custom_call.1} parent=19 // pred_region
          %s155 = sand.u32 %s39, 1
          %s156 = scalar_lea.sflag [#allocation3], %s155
          %s157 = sand.u32 %s39, 1
          %s158 = smul.addr %s157, 8
          %s159 = scalar_lea.vmem [#allocation2], %s158
          %s160 = smul.u32 2, %s23
          %s162 = ssub.s32 128, 128
          %163 = vsyncadd %s156, %s162
          %s164 = smul.addr %s22, 2
          %s165 = sadd.s32 %s160, %s164
          %s166 = smul.addr %s165, 64
          %s167 = scalar_lea.hbm %s0, %s166
          %s169 = sshll.u32 %s159, 4
          %s170 = int_to_ptr.vmem [resolvable:$true] %s169
          %172 = dma.hbm_to_vmem [thread:$0]  %s167, 128, %s170, %s156
        $region24: #{tpu_custom_call.1} parent=19 // pred_fallthru
          _
        // Predicated region
        $region25: #{tpu_custom_call.1} parent=19 // pred_check
          %p173 = pneg %p77
        $region26: #{tpu_custom_call.1} parent=19 // pred_check_branch
          %175 = sbr.rel (%p173) target = $region28
        $region27: #{tpu_custom_call.1} parent=19 // pred_region
          %s176 = smul.u32 2, %s23
          %p177 = scmp.lt.s32.totalorder %s22, 1
          %s178 = scalar_select %p177, %s22, 1
          %p179 = scmp.lt.s32.totalorder %s176, 1
          %s180 = scalar_select %p179, %s176, 1
          %s181 = smul.addr %s178, 2
          %s182 = sadd.s32 %s180, %s181
          %s183 = scalar_lea.vmem %s1, %s182
          %s184 = smul.u32 2, %s23
        $region28: #{tpu_custom_call.1} parent=19 // pred_fallthru
          _
      $region20: #{tpu_custom_call.1} parent=5 // pred_fallthru
        _
      %p185 = scmp.le.s32.totalorder 1, %s15
      %p186 = scmp.lt.s32.totalorder %s15, 3
      %p187 = pnand %p185, %p186
      %p188 = pneg %p187
      // Predicated region
      $region29: #{tpu_custom_call.1} parent=5 // pred_check
        _
      $region30: #{tpu_custom_call.1} parent=5 // pred_check_branch
        %190 = sbr.rel (%p187) target = $region32
      $region31: #{tpu_custom_call.1} parent=5 // pred_region
        %s191 = ssub.s32 %s15, 1
        %s192 = sand.u32 %s42, 1
        %s193 = scalar_lea.sflag [#allocation3], %s192
        %s194 = sand.u32 %s42, 1
        %s195 = smul.addr %s194, 8
        %s196 = scalar_lea.vmem [#allocation2], %s195
        // Predicated region
        $region33: #{tpu_custom_call.1} parent=31 // pred_check
          %p197 = pneg %p55
        $region34: #{tpu_custom_call.1} parent=31 // pred_check_branch
          %199 = sbr.rel (%p197) target = $region36
        $region35: #{tpu_custom_call.1} parent=31 // pred_region
          %200 = dma.done %s193, 128
        $region36: #{tpu_custom_call.1} parent=31 // pred_fallthru
          _
        %s201 = sand.u32 %s42, 1
        %s202 = scalar_lea.sflag [#allocation3], %s201
        %s203 = sand.u32 %s42, 1
        %s204 = smul.addr %s203, 8
        %s205 = scalar_lea.vmem [#allocation2], %s204
        %p206 = pneg %p55
        %p207 = pneg %p52
        %s208 = smul.u32 2, %s25
        %p209 = scmp.lt.s32.totalorder %s24, 1
        %s210 = scalar_select %p209, %s24, 1
        %p211 = scmp.lt.s32.totalorder %s208, 1
        %s212 = scalar_select %p211, %s208, 1
        %s213 = smul.addr %s210, 2
        %s214 = sadd.s32 %s212, %s213
        %s215 = scalar_lea.vmem %s1, %s214
        %p216 = pneg %p83
        %p217 = pneg %p80
        %p218 = pneg %p104
        %p219 = pneg %p101
        %p220 = pneg %p130
        %p221 = pneg %p127
        %s222 = sand.u32 %s117, 1
        %s223 = scalar_lea.sflag [#allocation4], %s222
        %s224 = sand.u32 %s117, 1
        %s225 = smul.addr %s224, 2
        %s226 = scalar_lea.vmem [#allocation5], %s225
        %s227 = smul.u32 2, %s25
        %s228 = smul.u32 2, %s25
        %p229 = scmp.lt.s32.totalorder %s24, 1
        %s230 = scalar_select %p229, %s24, 1
        %p231 = scmp.lt.s32.totalorder %s228, 1
        %s232 = scalar_select %p231, %s228, 1
        %s233 = smul.addr %s230, 2
        %s234 = sadd.s32 %s232, %s233
        %s235 = scalar_lea.vmem %s1, %s234
        %s236 = smul.u32 2, %s25
        %p237 = scmp.eq.s32.totalorder %s25, 0
        // Predicated region
        $region37: #{tpu_custom_call.1} parent=31 // pred_check
          %p238 = pneg %p237
        $region38: #{tpu_custom_call.1} parent=31 // pred_check_branch
          %240 = sbr.rel (%p238) target = $region40
        $region39: #{tpu_custom_call.1} parent=31 // pred_region
          %v241 = vlaneseq
          %vm242 = vcmp.ge.s32.totalorder %v241, 0
          %vm243 = vcmp.lt.s32.totalorder %v241, 256
          %vm244 = vmand %vm242, %vm243
          %245 = vst.msk [vmem:[%s226] sm:$0x3] %vm244, 0.0
        $region40: #{tpu_custom_call.1} parent=31 // pred_fallthru
          _
        %v246 = vld [vmem:[%s196] sm:$0xff]
        %v247 = vld [vmem:[%s235] sm:$0x3]
        %v249 = vcombine.high %v246, %v246
        %vm251 = vcmask 1043456
        %v252 = vsel %vm251, %v246, -inf
        %v253 = vrot.slane %v252, 4
        %v254 = vmax.f32 %v252, %v253
        %v255 = vrot.slane %v254, 2
        %v256 = vmax.f32 %v254, %v255
        %v257 = vrot.slane %v256, 1
        %v258 = vmax.f32 %v256, %v257
        %v259 = vsel %vm251, %v249, -inf
        %v260 = vrot.slane %v259, 4
        %v261 = vmax.f32 %v259, %v260
        %v262 = vrot.slane %v261, 2
        %v263 = vmax.f32 %v261, %v262
        %v264 = vrot.slane %v263, 1
        %v265 = vmax.f32 %v263, %v264
        %v268 = vcombine.low %v258, %v265
        %v270 = vsub.f32 %v246, %v268
        %v271 = vmul.f32 %v270, 1.442695
        %v272 = vpow.pop %v271
        %v274 = vcombine.high %v272, %v272
        %v276 = vsel %vm251, %v272, 0.0
        %v277 = vrot.slane %v276, 4
        %v278 = vadd.f32 %v276, %v277
        %v279 = vrot.slane %v278, 2
        %v280 = vadd.f32 %v278, %v279
        %v281 = vrot.slane %v280, 1
        %v282 = vadd.f32 %v280, %v281
        %v283 = vsel %vm251, %v274, 0.0
        %v284 = vrot.slane %v283, 4
        %v285 = vadd.f32 %v283, %v284
        %v286 = vrot.slane %v285, 2
        %v287 = vadd.f32 %v285, %v286
        %v288 = vrot.slane %v287, 1
        %v289 = vadd.f32 %v287, %v288
        %v290 = vlog2.pop %v282
        %v291 = vmul.f32 %v290, 0.6931472
        %v292 = vlog2.pop %v289
        %v293 = vmul.f32 %v292, 0.6931472
        %v294 = vlaneseq
        %v295 = vshrl.u32 %v294, 7
        %v296 = vlaneseq
        %v297 = vshrl.u32 %v296, 7
        %v298 = vsub.s32 0, %v297
        %v299 = vrot.slane %v247, %v298
        %v300 = vlaneseq
        %v301 = vshrl.u32 %v300, 7
        %v302 = vsub.s32 1, %v301
        %v303 = vrot.slane %v247, %v302
        %vm304 = vcmp.eq.s32.totalorder %v295, %v299
        %vm305 = vcmp.eq.s32.totalorder %v295, %v303
        %v307 = vcombine.high %v270, %v270
        %v309 = vsel %vm304, %v270, 0.0
        %v310 = vsel %vm305, %v307, 0.0
        %v311 = vsel %vm251, %v309, 0.0
        %v312 = vrot.slane %v311, 4
        %v313 = vadd.f32 %v311, %v312
        %v314 = vrot.slane %v313, 2
        %v315 = vadd.f32 %v313, %v314
        %v316 = vrot.slane %v315, 1
        %v317 = vadd.f32 %v315, %v316
        %v318 = vsel %vm251, %v310, 0.0
        %v319 = vrot.slane %v318, 4
        %v320 = vadd.f32 %v318, %v319
        %v321 = vrot.slane %v320, 2
        %v322 = vadd.f32 %v320, %v321
        %v323 = vrot.slane %v322, 1
        %v324 = vadd.f32 %v322, %v323
        %v325 = vsub.f32 %v317, %v291
        %v326 = vsub.f32 %v324, %v293
        %v327 = vmul.f32 %v325, 1.442695
        %v328 = vpow.pop %v327
        %v329 = vmul.f32 %v326, 1.442695
        %v330 = vpow.pop %v329
        %v331 = vld [vmem:[%s2] sm:$0xf]
        %333 = vset.pattern.permute.xlu0 0
        %334 = vperm.xlu0 %333, %v331
        %v335 = vpop.permute.xlu0 %334
        %v337 = vsel %vm304, %v335, 0.0
        %v338 = vsel %vm305, %v335, 0.0
        %v339 = vsel %vm251, %v337, 0.0
        %v340 = vrot.slane %v339, 4
        %v341 = vadd.f32 %v339, %v340
        %v342 = vrot.slane %v341, 2
        %v343 = vadd.f32 %v341, %v342
        %v344 = vrot.slane %v343, 1
        %v345 = vadd.f32 %v343, %v344
        %v346 = vsel %vm251, %v338, 0.0
        %v347 = vrot.slane %v346, 4
        %v348 = vadd.f32 %v346, %v347
        %v349 = vrot.slane %v348, 2
        %v350 = vadd.f32 %v348, %v349
        %v351 = vrot.slane %v350, 1
        %v352 = vadd.f32 %v350, %v351
        %v353 = vmul.f32 %v325, %v345
        %v354 = vmul.f32 %v326, %v352
        %v355 = vsub.f32 1.0, %v328
        %v356 = vsub.f32 1.0, %v330
        %v357 = vmul.f32 %v355, %v355
        %v358 = vmul.f32 %v356, %v356
        %v359 = vmul.f32 %v357, %v353
        %v360 = vmul.f32 %v358, %v354
        %v361 = vsub.f32 0.0, %v359
        %v362 = vsub.f32 0.0, %v360
        %v363 = vld [vmem:[%s226] sm:$0x3]
        %v366 = vcombine.low %v361, %v362
        %v368 = vunpack.c.l.s4 1966171168
        %v369 = vunpack.c.0.s8 %v368
        %v370 = vlaneseq
        %v371 = vshrl.u32 %v370, 7
        %v372 = vsub.s32 %v369, %v371
        %v373 = vrot.slane %v366, %v372
        %v375 = vunpack.c.l.s4 1966171168
        %v376 = vunpack.c.0.s8 %v375
        %v377 = vlaneseq
        %v378 = vshrl.u32 %v377, 7
        %v379 = vsub.s32 %v376, %v378
        %v380 = vrot.slane %v373, %v379
        %v382 = vadd.f32 %v363, %v380
        %v383 = vlaneseq
        %vm384 = vcmp.ge.s32.totalorder %v383, 0
        %vm385 = vcmp.lt.s32.totalorder %v383, 256
        %vm386 = vmand %vm384, %vm385
        %387 = vst.msk [vmem:[%s226] sm:$0x3] %vm386, %v382
        %s388 = sand.u32 %s117, 1
        %s389 = scalar_lea.sflag [#allocation4], %s388
        %s390 = sand.u32 %s117, 1
        %s391 = smul.addr %s390, 2
        %s392 = scalar_lea.vmem [#allocation5], %s391
        // Predicated region
        $region41: #{tpu_custom_call.1} parent=31 // pred_check
          %p393 = pneg %p127
        $region42: #{tpu_custom_call.1} parent=31 // pred_check_branch
          %395 = sbr.rel (%p393) target = $region44
        $region43: #{tpu_custom_call.1} parent=31 // pred_region
          %s397 = ssub.s32 32, 32
          %398 = vsyncadd %s389, %s397
          %s399 = smul.addr %s24, 2
          %s400 = smul.addr %s399, 16
          %s401 = scalar_lea.hbm %s3, %s400
          %s403 = sshll.u32 %s392, 4
          %s404 = int_to_ptr.vmem [resolvable:$true] %s403
          %406 = dma.vmem_to_hbm [thread:$0]  %s404, 32, %s401, %s389
        $region44: #{tpu_custom_call.1} parent=31 // pred_fallthru
          _
      $region32: #{tpu_custom_call.1} parent=5 // pred_fallthru
        _
      %p407 = scmp.le.s32.totalorder 2, %s15
      // Predicated region
      $region45: #{tpu_custom_call.1} parent=5 // pred_check
        %p408 = pneg %p407
      $region46: #{tpu_custom_call.1} parent=5 // pred_check_branch
        %410 = sbr.rel (%p408) target = $region48
      $region47: #{tpu_custom_call.1} parent=5 // pred_region
        %s411 = ssub.s32 %s15, 2
        // Predicated region
        $region49: #{tpu_custom_call.1} parent=47 // pred_check
          %p412 = pneg %p133
        $region50: #{tpu_custom_call.1} parent=47 // pred_check_branch
          %414 = sbr.rel (%p412) target = $region52
        $region51: #{tpu_custom_call.1} parent=47 // pred_region
          %s415 = sand.u32 %s118, 1
          %s416 = scalar_lea.sflag [#allocation4], %s415
          %s417 = sand.u32 %s118, 1
          %s418 = smul.addr %s417, 2
          %s419 = scalar_lea.vmem [#allocation5], %s418
          %420 = dma.done %s416, 32
        $region52: #{tpu_custom_call.1} parent=47 // pred_fallthru
          _
      $region48: #{tpu_custom_call.1} parent=5 // pred_fallthru
        _
    $region6: #{tpu_custom_call.1} parent=1 // loop_footer
      %s19 = sadd.s32 1, %s15
    $region7: #{tpu_custom_call.1} parent=1 // loop_footer_branch
      %14 = sbr.rel target = $region3
    $region8: #{tpu_custom_call.1} parent=1 // loop_exit
      _
    %421 = vsyncpa [#allocation3], 1
    %s422 = scalar_lea.sflag [#allocation3], 1
    %423 = vsyncpa %s422, 1
    %424 = vsyncpa [#allocation4], 1
    %s425 = scalar_lea.sflag [#allocation4], 1
    %426 = vsyncpa %s425, 1

</llo_original>
